<compile_context>
chip_gen: v6e
topology: v6e:2x2x1
jax: 0.10.0
libtpu: 0.0.40
codegen_flags: <defaults>
</compile_context>

<pallas_src>
import functools

import jax
import jax.numpy as jnp
from jax.experimental import pallas as pl
from jax.experimental.pallas import tpu as pltpu

_LANE = 128                       # lane (last-dim) tiling
_SUBLANE = 8                      # f32 sublane tiling
_K_TILE = 512                     # K padded to this once at prepare time
_SMALL_PATH_BYTES = 2 * 1024 * 1024   # no-grid path only for truly tiny problems
_SMALL_PATH_MAX_M = 256           # larger M -> gridded path (v7x: 2 TCs want blocks)
_VMEM_LIMIT_BYTES = 48 * 1024 * 1024  # explicit scoped-VMEM budget (< v7x 64 MiB phys)


def _round_up(x, m):
    return (x + m - 1) // m * m


# ---------------------------------------------------------------------------
# Small path: whole problem lives in VMEM -> no grid, one fused MXU matmul +
# bias add.  x arrives UNPADDED; the kernel slices the leading in_features
# rows of the (pre-padded, bf16) weight instead of the wrapper padding x.
# ---------------------------------------------------------------------------
def _linear_small_kernel(x_ref, w_ref, b_ref, o_ref, *, k):
    x = x_ref[...]                               # (B, K0) bf16
    w = w_ref[:k, :]                             # (K0, N_pad) bf16, static slice
    acc = jnp.dot(x, w, preferred_element_type=jnp.float32)
    o_ref[...] = (acc + b_ref[...]).astype(o_ref.dtype)


# ---------------------------------------------------------------------------
# Tiled path: grid over (M, N, K) with an f32 VMEM accumulator; bias add and
# downcast happen on the last K step.  bf16 operands, f32 accumulate.
# ---------------------------------------------------------------------------
def _linear_tiled_kernel(x_ref, w_ref, b_ref, o_ref, acc_ref):
    @pl.when(pl.program_id(2) == 0)
    def _():
        acc_ref[...] = jnp.zeros_like(acc_ref)

    acc_ref[...] += jnp.dot(x_ref[...], w_ref[...],
                            preferred_element_type=jnp.float32)

    @pl.when(pl.program_id(2) == pl.num_programs(2) - 1)
    def _():
        o_ref[...] = (acc_ref[...] + b_ref[...]).astype(o_ref.dtype)


def prepare_linear_params(w, b, *, compute_dtype=jnp.bfloat16):
    """One-time parameter prep: torch Linear layout -> TPU-friendly layout.

    w: (out_features, in_features), b: (out_features,)
    Returns W^T cast to `compute_dtype` (bf16 -> native MXU rate) and
    zero-padded to (round_up(in, _K_TILE), round_up(out, 128)), plus the bias
    as f32 (1, N_pad).  Transpose + cast + padding all happen once here,
    never on the forward path.
    """
    out_features, in_features = w.shape
    k_pad = _round_up(in_features, _K_TILE)
    n_pad = _round_up(out_features, _LANE)
    w_t = (jnp.zeros((k_pad, n_pad), compute_dtype)
           .at[:in_features, :out_features].set(w.T.astype(compute_dtype)))
    b2d = (jnp.zeros((1, n_pad), jnp.float32)
           .at[0, :out_features].set(b.astype(jnp.float32)))
    return w_t, b2d


@functools.partial(jax.jit, static_argnames=("out_features", "force_tiled"))
def dummy_torch_model_forward(x, w_t_pad, b_pad, *, out_features, force_tiled=False):
    """forward(x) = Linear(x.view(batch, -1)); params from prepare_linear_params."""
    batch = x.shape[0]
    x_flat = x.reshape(batch, -1)
    in_features = x_flat.shape[1]
    k_pad, n_pad = w_t_pad.shape
    assert in_features <= k_pad and out_features <= n_pad
    out_dtype = x.dtype
    compute_dtype = w_t_pad.dtype

    # bf16 activations (f32 accumulate in-kernel): ~2x MXU throughput on
    # v5e/v6e/v7x and half the HBM/VMEM traffic for x.
    x_c = x_flat.astype(compute_dtype)
    itemsize = jnp.dtype(compute_dtype).itemsize

    m_pad8 = _round_up(batch, _SUBLANE)
    resident = ((batch * in_features + k_pad * n_pad) * itemsize
                + (batch + 1) * n_pad * 4)
    small = (resident <= _SMALL_PATH_BYTES
             and m_pad8 <= _SMALL_PATH_MAX_M
             and not force_tiled)

    cost = pl.CostEstimate(
        flops=2 * batch * in_features * out_features,
        transcendentals=0,
        bytes_accessed=((batch * in_features + k_pad * n_pad) * itemsize
                        + batch * n_pad * 4),
    )

    if small:
        # -------- no-grid single block: zero per-step pipeline overhead ------
        y = pl.pallas_call(
            functools.partial(_linear_small_kernel, k=in_features),
            out_shape=jax.ShapeDtypeStruct((batch, n_pad), out_dtype),
            in_specs=[
                pl.BlockSpec(memory_space=pltpu.MemorySpace.VMEM),
                pl.BlockSpec(memory_space=pltpu.MemorySpace.VMEM),
                pl.BlockSpec(memory_space=pltpu.MemorySpace.VMEM),
            ],
            out_specs=pl.BlockSpec(memory_space=pltpu.MemorySpace.VMEM),
            cost_estimate=cost,
        )(x_c, w_t_pad, b_pad)
        if n_pad != out_features:
            y = y[:, :out_features]
        return y

    # --------------------------- tiled / pipelined path ----------------------
    # Large tiles: tm up to 512, tn 256/512 when N allows (fills v6e/v7x's
    # 2x256 MXU), tk = 512 (K is pre-padded).  Double-buffered bf16 blocks at
    # the max (512,512,512) config total ~5 MiB -> comfortably inside v7x's
    # 32 MiB default scoped VMEM; vmem_limit_bytes gives explicit headroom.
    if m_pad8 >= 512:
        tm = 512
    elif m_pad8 >= 256:
        tm = 256
    elif m_pad8 >= 128:
        tm = 128
    else:
        tm = m_pad8
    m_pad = _round_up(batch, tm)

    if n_pad % 512 == 0:
        tn = 512
    elif n_pad % 256 == 0:
        tn = 256
    else:
        tn = _LANE          # only when out_features itself is that small
    tk = _K_TILE if k_pad % _K_TILE == 0 else _LANE

    # Pad x only when the caller's shapes are genuinely ragged; the common
    # real case (batch % tm == 0, in_features % 512 == 0) needs no pad.
    if batch != m_pad or in_features != k_pad:
        x_in = (jnp.zeros((m_pad, k_pad), compute_dtype)
                .at[:batch, :in_features].set(x_c))
    else:
        x_in = x_c

    # TODO(synk): add pipeline_mode=pl.Buffered(3) on the x/w BlockSpecs if DMA
    # is still exposed at very long K with short M/N.
    y = pl.pallas_call(
        _linear_tiled_kernel,
        out_shape=jax.ShapeDtypeStruct((m_pad, n_pad), out_dtype),
        grid_spec=pltpu.PrefetchScalarGridSpec(
            num_scalar_prefetch=0,
            grid=(m_pad // tm, n_pad // tn, k_pad // tk),
            in_specs=[
                pl.BlockSpec((tm, tk), lambda i, j, k: (i, k)),
                pl.BlockSpec((tk, tn), lambda i, j, k: (k, j)),
                pl.BlockSpec((1, tn), lambda i, j, k: (0, j)),
            ],
            out_specs=pl.BlockSpec((tm, tn), lambda i, j, k: (i, j)),
            scratch_shapes=[pltpu.VMEM((tm, tn), jnp.float32)],
        ),
        compiler_params=pltpu.CompilerParams(
            dimension_semantics=("parallel", "parallel", "arbitrary"),
            vmem_limit_bytes=_VMEM_LIMIT_BYTES,
        ),
        cost_estimate=cost,
    )(x_in, w_t_pad, b_pad)

    if m_pad != batch or n_pad != out_features:
        y = y[:batch, :out_features]
    return y


if __name__ == "__main__":
    # Shapes consistent with forward: x (batch, C, H, W) flattened to
    # (batch, input_size); Linear(input_size -> output_size=10).
    batch, C, H, W = 2, 4, 4, 4
    input_size = C * H * W      # 64
    output_size = 10

    key = jax.random.PRNGKey(0)
    kx, kw, kb = jax.random.split(key, 3)

    x = jax.random.normal(kx, (batch, C, H, W), dtype=jnp.float32)

    # Deterministic init mimicking torch.nn.Linear: U(-1/sqrt(in), 1/sqrt(in))
    bound = 1.0 / jnp.sqrt(jnp.float32(input_size))
    w = jax.random.uniform(kw, (output_size, input_size), jnp.float32, -bound, bound)
    b = jax.random.uniform(kb, (output_size,), jnp.float32, -bound, bound)

    # One-time parameter prep (transpose + bf16 cast + zero-pad), off hot path.
    w_t_pad, b_pad = prepare_linear_params(w, b)

    # Small (no-grid) path.
    y = dummy_torch_model_forward(x, w_t_pad, b_pad, out_features=output_size)
    jax.block_until_ready(y)

    # Also exercise the tiled/accumulator path at the same small shape.
    y_tiled = dummy_torch_model_forward(
        x, w_t_pad, b_pad, out_features=output_size, force_tiled=True)
    jax.block_until_ready(y_tiled)

    # References: (a) same bf16-input / f32-accumulate numerics as the kernel,
    # (b) plain f32 for a coarse semantic sanity check.
    x_flat = x.reshape(batch, -1)
    y_ref_bf16 = jnp.dot(x_flat.astype(jnp.bfloat16), w.T.astype(jnp.bfloat16),
                         preferred_element_type=jnp.float32) + b
    y_ref_f32 = x_flat @ w.T + b

    assert y.shape == (batch, output_size)
    assert y_tiled.shape == (batch, output_size)
    assert jnp.allclose(y, y_ref_bf16, atol=1e-3, rtol=1e-3)
    assert jnp.allclose(y_tiled, y_ref_bf16, atol=1e-3, rtol=1e-3)
    assert jnp.allclose(y, y_ref_f32, atol=5e-2, rtol=5e-2)
    assert jnp.allclose(y_tiled, y_ref_f32, atol=5e-2, rtol=5e-2)

    print("KERNEL_OK")
</pallas_src>

<mosaic_0001>
module attributes {stable_mosaic.version = 11 : i64} {
  func.func @_linear_small_kernel(%arg0: memref<2x64xbf16, #tpu.memory_space<vmem>>, %arg1: memref<512x128xbf16, #tpu.memory_space<vmem>>, %arg2: memref<1x128xf32, #tpu.memory_space<vmem>>, %arg3: memref<2x128xf32, #tpu.memory_space<vmem>>) attributes {dimension_semantics = [], scalar_prefetch = 0 : i64, scratch_operands = 0 : i64, tpu.core_type = #tpu.core_type<tc>} {
    %c0 = arith.constant 0 : index
    %c0_0 = arith.constant 0 : index
    %0 = vector.load %arg0[%c0, %c0_0] : memref<2x64xbf16, #tpu.memory_space<vmem>>, vector<2x64xbf16>
    %c0_1 = arith.constant 0 : index
    %c0_2 = arith.constant 0 : index
    %1 = vector.load %arg1[%c0_1, %c0_2] : memref<512x128xbf16, #tpu.memory_space<vmem>>, vector<64x128xbf16>
    %cst = arith.constant dense<0.000000e+00> : vector<2x128xf32>
    %2 = tpu.matmul %0, %1, %cst {dimension_numbers = #tpu.dot_dimension_numbers<[1], [0], [0], [1], [0, 0, 1, 1], [], []>} : vector<2x64xbf16>, vector<64x128xbf16>, vector<2x128xf32> -> vector<2x128xf32>
    %c0_3 = arith.constant 0 : index
    %c0_4 = arith.constant 0 : index
    %3 = vector.load %arg2[%c0_3, %c0_4] : memref<1x128xf32, #tpu.memory_space<vmem>>, vector<1x128xf32>
    %4 = vector.broadcast %3 : vector<1x128xf32> to vector<2x128xf32>
    %5 = arith.addf %2, %4 : vector<2x128xf32>
    %c0_5 = arith.constant 0 : index
    %c0_6 = arith.constant 0 : index
    %6 = vector.load %arg3[%c0_5, %c0_6] : memref<2x128xf32, #tpu.memory_space<vmem>>, vector<2x128xf32>
    tpu.vector_store %arg3[%c0_5, %c0_6], %5 {strides = array<i32>} : memref<2x128xf32, #tpu.memory_space<vmem>>, vector<2x128xf32>,
    return
  }
}

</mosaic_0001>

<llo_original>
// kernel: dummy_torch_model_forward.1
$region0: #{dummy_torch_model_forward.1}
  #allocation0 [shape = 'u32[]', space=smem, size = 0x4, offset = 0x4, fixed_abs, tag = 'smem constant byte address 0x4 - core index']
  #allocation1 [shape = 'u32[144,128]{1,0:T(1,128)}', space=vmem, size = 0x12000, scoped, tag = 'internal scratch']
  %s0 = inlined_call_operand.vmem [shape: bf16[2,64], index: 0, kind: input, shape index: {}]
  %s1 = inlined_call_operand.hbm [shape: bf16[512,128], index: 1, kind: input, shape index: {}]
  %s2 = inlined_call_operand.vmem [shape: f32[1,128], index: 2, kind: input, shape index: {}]
  %s3 = inlined_call_operand.hbm [shape: f32[2,128], index: 3, kind: output, shape index: {}]
  %s4 = sld [smem:[#allocation0]]
  $region26: #{dummy_torch_model_forward.1} parent=0
    _
  %s6 = ssub.s32 1, %s4
  %s7 = scalar_select 0, %s6, %s4
  $region1: #{dummy_torch_model_forward.1} parent=0
    #allocation2 [shape = 'u8[131072]{0}', space=vmem, size = 0x20000, scoped, tag = 'input window, operand 1, single buffered']
    #allocation3 [shape = 's32[1]{0}', space=sflag, size = 0x4, scoped, tag = 'scoped memory for dummy_torch_model_forward.1']
    #allocation4 [shape = 's32[1]{0}', space=sflag, size = 0x4, scoped, tag = 'scoped memory for dummy_torch_model_forward.1']
    #allocation5 [shape = 'u8[1024]{0}', space=vmem, size = 0x400, scoped, tag = 'output window, operand 0, single buffered']
    %8 = vsyncpa [#allocation3], 0
    %9 = vsyncpa [#allocation4], 0
    // Predicated region
    $region2: #{dummy_torch_model_forward.1} parent=1 // pred_check
      _
    $region3: #{dummy_torch_model_forward.1} parent=1 // pred_check_branch
      %11 = sbr.rel (0) target = $region5
    $region4: #{dummy_torch_model_forward.1} parent=1 // pred_region
      _
    $region5: #{dummy_torch_model_forward.1} parent=1 // pred_fallthru
      _
    // Predicated region
    $region6: #{dummy_torch_model_forward.1} parent=1 // pred_check
      _
    $region7: #{dummy_torch_model_forward.1} parent=1 // pred_check_branch
      %13 = sbr.rel (0) target = $region9
    $region8: #{dummy_torch_model_forward.1} parent=1 // pred_region
      %s15 = ssub.s32 4096, 4096
      %16 = vsyncadd [#allocation3], %s15
      %s17 = sshll.u32 [#allocation2], 4
      %s18 = int_to_ptr.vmem [resolvable:$true] %s17
      %23 = dma.hbm_to_vmem [thread:$0]  %s1, 4096, %s18, [#allocation3], 64, 64, 4
    $region9: #{dummy_torch_model_forward.1} parent=1 // pred_fallthru
      _
    // Predicated region
    $region10: #{dummy_torch_model_forward.1} parent=1 // pred_check
      _
    $region11: #{dummy_torch_model_forward.1} parent=1 // pred_check_branch
      %25 = sbr.rel (0) target = $region13
    $region12: #{dummy_torch_model_forward.1} parent=1 // pred_region
      _
    $region13: #{dummy_torch_model_forward.1} parent=1 // pred_fallthru
      _
    // Predicated region
    $region14: #{dummy_torch_model_forward.1} parent=1 // pred_check
      _
    $region15: #{dummy_torch_model_forward.1} parent=1 // pred_check_branch
      %27 = sbr.rel (0) target = $region17
    $region16: #{dummy_torch_model_forward.1} parent=1 // pred_region
      %28 = dma.done [#allocation3], 4096
    $region17: #{dummy_torch_model_forward.1} parent=1 // pred_fallthru
      _
    %v30 = vld [vmem:[%s0] sm:$0x1]
    %v31 = vld [vmem:[#allocation2] sm:$0xf]
    %v32 = vld [vmem:[#allocation2 + $0x4] sm:$0xf]
    %v33 = vld [vmem:[#allocation2 + $0x8] sm:$0xf]
    %v34 = vld [vmem:[#allocation2 + $0xc] sm:$0xf]
    %v35 = vld [vmem:[#allocation2 + $0x10] sm:$0xf]
    %v36 = vld [vmem:[#allocation2 + $0x14] sm:$0xf]
    %v37 = vld [vmem:[#allocation2 + $0x18] sm:$0xf]
    %v38 = vld [vmem:[#allocation2 + $0x1c] sm:$0xf]
    %v39 = vld [vmem:[%s2] sm:$0x1]
    %v41 = vlaneseq
    %v42 = vshrl.u32 %v41, 7
    %v43 = vsub.s32 0, %v42
    %v44 = vrot.slane %v39, %v43
    %v54 = vunpack.c.l.b16 %v31
    %v55 = vunpack.c.l.b16 %v32
    %v56 = vunpack.c.l.b16 %v33
    %v57 = vunpack.c.l.b16 %v34
    %v58 = vunpack.c.l.b16 %v35
    %v59 = vunpack.c.l.b16 %v36
    %v60 = vunpack.c.l.b16 %v37
    %v61 = vunpack.c.l.b16 %v38
    %v62 = vpack.c.b16 %v55, %v54
    %v63 = vpack.c.b16 %v57, %v56
    %v64 = vpack.c.b16 %v59, %v58
    %v65 = vpack.c.b16 %v61, %v60
    %vm70 = vcmask 523264
    %v72 = vsel %vm70, %v30, 0
    %74 = vmatprep.subr.bf16.mxu0 0
    %75 = vmatpush1.bf16.msra.mxu0 0
    %76 = vmatprep.subr.bf16.mxu0 0
    %77 = vmatpush1.bf16.msra.mxu0 0
    %78 = vmatprep.subr.bf16.mxu0 0
    %79 = vmatpush1.bf16.msra.mxu0 0
    %80 = vmatprep.subr.bf16.mxu0 0
    %81 = vmatpush1.bf16.msra.mxu0 0
    %82 = vmatprep.subr.bf16.mxu0 0
    %83 = vmatpush1.bf16.msra.mxu0 %v65
    %84 = vmatprep.subr.bf16.mxu0 0
    %85 = vmatpush1.bf16.msra.mxu0 %v64
    %86 = vmatprep.subr.bf16.mxu0 0
    %87 = vmatpush1.bf16.msra.mxu0 %v63
    %88 = vmatprep.subr.bf16.mxu0 0
    %89 = vmatpush1.bf16.msra.mxu0 %v62
    %90 = vmatprep.subr.bf16.mxu0 0
    %91 = vmatpush2.bf16.msra.mxu0 0
    %92 = vmatprep.subr.bf16.mxu0 0
    %93 = vmatpush2.bf16.msra.mxu0 0
    %94 = vmatprep.subr.bf16.mxu0 0
    %95 = vmatpush2.bf16.msra.mxu0 0
    %96 = vmatprep.subr.bf16.mxu0 0
    %97 = vmatpush2.bf16.msra.mxu0 0
    %98 = vmatprep.subr.bf16.mxu0 0
    %99 = vmatpush2.bf16.msra.mxu0 0
    %100 = vmatprep.subr.bf16.mxu0 0
    %101 = vmatpush2.bf16.msra.mxu0 0
    %102 = vmatprep.subr.bf16.mxu0 0
    %103 = vmatpush2.bf16.msra.mxu0 0
    %104 = vmatprep.subr.bf16.mxu0 0
    %105 = vmatpush2.bf16.msra.mxu0 0
    %106 = vmatprep.mubr.bf16.mxu0 0
    %107 = vmatmul.mubr.bf16.gmra.mxu0 %v72
    %v108 = vpop.f32.mrf.mxu0
    %v109 = vadd.f32 %v44, %v108
    %v110 = vpop.f32.mrf.mxu0
    %v111 = vpop.f32.mrf.mxu0
    %v112 = vpop.f32.mrf.mxu0
    %113 = vdwg.mxu0
    %114 = vst [vmem:[#allocation5] sm:$0x3] %v109
    // Predicated region
    $region18: #{dummy_torch_model_forward.1} parent=1 // pred_check
      _
    $region19: #{dummy_torch_model_forward.1} parent=1 // pred_check_branch
      %116 = sbr.rel (0) target = $region21
    $region20: #{dummy_torch_model_forward.1} parent=1 // pred_region
      %s118 = ssub.s32 32, 32
      %119 = vsyncadd [#allocation4], %s118
      %s121 = sshll.u32 [#allocation5], 4
      %s122 = int_to_ptr.vmem [resolvable:$true] %s121
      %124 = dma.vmem_to_hbm [thread:$0]  %s122, 32, %s3, [#allocation4]
    $region21: #{dummy_torch_model_forward.1} parent=1 // pred_fallthru
      _
    // Predicated region
    $region22: #{dummy_torch_model_forward.1} parent=1 // pred_check
      _
    $region23: #{dummy_torch_model_forward.1} parent=1 // pred_check_branch
      %126 = sbr.rel (0) target = $region25
    $region24: #{dummy_torch_model_forward.1} parent=1 // pred_region
      %127 = dma.done [#allocation4], 32
    $region25: #{dummy_torch_model_forward.1} parent=1 // pred_fallthru
      _
    %128 = vsyncpa [#allocation3], 1
    %129 = vsyncpa [#allocation4], 1

</llo_original>
